<compile_context>
chip_gen: v5e
topology: v5e:2x2
jax: 0.10.0
libtpu: 0.0.40
codegen_flags: <defaults>
</compile_context>

<pallas_src>
import functools

import numpy as np
import jax
import jax.numpy as jnp
from jax.experimental import pallas as pl
from jax.experimental.pallas import tpu as pltpu


def _round_up(n, m):
    """Round n up to a positive multiple of m (at least m)."""
    return ((max(int(n), 1) + m - 1) // m) * m


# ---------------------------------------------------------------------------
# Fused evaluator kernel: out[0,0] = PIR, out[0,1] = IR
# ---------------------------------------------------------------------------
def _evaluator_kernel(acceptance_overlap, radius_sq, inv_n_pred, inv_n_corr,
                      src_length_c,
                      pred_tgt_ref, pred_src_ref,
                      gt_tgt_ref, gt_src_ref, gt_ovl_ref,
                      tgt_ref, src_ref, rot_ref, trans_ref,
                      out_ref):
    # ---- scalar (SMEM) loads first: issue on scalar slots, off the VPU path ----
    r00 = rot_ref[0]; r01 = rot_ref[1]; r02 = rot_ref[2]
    r10 = rot_ref[3]; r11 = rot_ref[4]; r12 = rot_ref[5]
    r20 = rot_ref[6]; r21 = rot_ref[7]; r22 = rot_ref[8]
    tr0 = trans_ref[0]; tr1 = trans_ref[1]; tr2 = trans_ref[2]

    # ---------------- coarse precision (PIR) ----------------
    # Predictions lane-dense (1, Np_pad); ground truth sublane-wise (Ng_pad, 1).
    # Packed key t * src_length_c + s  ==  the torch scatter-into-map + gather.
    pred_key = pred_tgt_ref[...] * src_length_c + pred_src_ref[...]   # (1, Np_pad) i32
    gt_key = gt_tgt_ref[...] * src_length_c + gt_src_ref[...]         # (Ng_pad, 1) i32
    # Pre-mask the gt column ONCE (O(Ng)); padded gt rows have ovl = -1e30.
    gt_key = jnp.where(gt_ovl_ref[...] > acceptance_overlap, gt_key, -1)

    # O(Np*Ng) part: one equality compare + select; reduce over sublanes.
    match = (gt_key == pred_key).astype(jnp.float32)   # (Ng_pad, Np_pad)
    hit = jnp.max(match, axis=0, keepdims=True)        # sublane reduce -> (1, Np_pad)
    out_ref[0, 0] = jnp.sum(hit) * inv_n_pred          # single cross-lane reduce

    # ---------------- fine precision (IR) ----------------
    # Lane-dense layout: rows are x/y/z, columns are the N correspondences.
    s0 = src_ref[0:1, :]
    s1 = src_ref[1:2, :]
    s2 = src_ref[2:3, :]
    tx = tgt_ref[0:1, :]
    ty = tgt_ref[1:2, :]
    tz = tgt_ref[2:3, :]

    # transformed_src[i] = sum_j rot[i, j] * src[j] + trans[i]  (== src @ rot.T + trans.T)
    w0 = r00 * s0 + r01 * s1 + r02 * s2 + tr0
    w1 = r10 * s0 + r11 * s1 + r12 * s2 + tr1
    w2 = r20 * s0 + r21 * s1 + r22 * s2 + tr2

    d0 = tx - w0
    d1 = ty - w1
    d2 = tz - w2
    dist_sq = d0 * d0 + d1 * d1 + d2 * d2               # (1, Nc_pad)

    inlier = (dist_sq < radius_sq).astype(jnp.float32)
    out_ref[0, 1] = jnp.sum(inlier) * inv_n_corr


# ---------------------------------------------------------------------------
# Jitted wrapper: pad / reshape under jit so prep fuses with the kernel feed.
# ---------------------------------------------------------------------------
@functools.partial(
    jax.jit,
    static_argnames=("acceptance_overlap", "acceptance_radius", "src_length_c"))
def evaluator_forward(gt_node_corr_indices, gt_node_corr_overlaps,
                      tgt_node_corr_indices, src_node_corr_indices,
                      tgt_corr_points, src_corr_points, rot, trans,
                      *, acceptance_overlap, acceptance_radius, src_length_c):
    n_pred = int(tgt_node_corr_indices.shape[0])
    n_gt = int(gt_node_corr_overlaps.shape[0])
    n_corr = int(src_corr_points.shape[0])

    np_pad = _round_up(n_pred, 128)    # predictions lane-dense
    ng_pad = _round_up(n_gt, 8)        # ground truth in sublane direction
    nc_pad = _round_up(n_corr, 128)    # fine points lane-dense

    # --- coarse predictions: (1, Np_pad) int32 rows, sentinel index -1
    #     -> in-kernel key = -(src_length_c) - 1 <= -2, never matches anything.
    pred_tgt = jnp.pad(tgt_node_corr_indices.astype(jnp.int32),
                       (0, np_pad - n_pred),
                       constant_values=-1).reshape(1, np_pad)
    pred_src = jnp.pad(src_node_corr_indices.astype(jnp.int32),
                       (0, np_pad - n_pred),
                       constant_values=-1).reshape(1, np_pad)

    # --- coarse ground truth: (Ng_pad, 1) columns; padded rows masked via ovl
    if n_gt > 0:
        gt_tgt = gt_node_corr_indices[:, 0].astype(jnp.int32)
        gt_src = gt_node_corr_indices[:, 1].astype(jnp.int32)
        ovl = gt_node_corr_overlaps.astype(jnp.float32)
    else:
        gt_tgt = jnp.zeros((0,), jnp.int32)
        gt_src = jnp.zeros((0,), jnp.int32)
        ovl = jnp.zeros((0,), jnp.float32)
    gt_tgt = jnp.pad(gt_tgt, (0, ng_pad - n_gt),
                     constant_values=0).reshape(ng_pad, 1)
    gt_src = jnp.pad(gt_src, (0, ng_pad - n_gt),
                     constant_values=0).reshape(ng_pad, 1)
    ovl = jnp.pad(ovl, (0, ng_pad - n_gt),
                  constant_values=-1e30).reshape(ng_pad, 1)

    # --- fine: (3, N) lane-dense layout, padded points can never be inliers
    if n_corr > 0:
        src_t = src_corr_points.astype(jnp.float32).T     # (3, N)
        tgt_t = tgt_corr_points.astype(jnp.float32).T     # (3, N)
    else:
        src_t = jnp.zeros((3, 0), jnp.float32)
        tgt_t = jnp.zeros((3, 0), jnp.float32)
    src_t = jnp.pad(src_t, ((0, 0), (0, nc_pad - n_corr)), constant_values=0.0)
    tgt_t = jnp.pad(tgt_t, ((0, 0), (0, nc_pad - n_corr)), constant_values=1e6)

    rot_flat = rot.astype(jnp.float32).reshape(9)          # row-major rot[i, j]
    trans_flat = trans.astype(jnp.float32).reshape(3)

    kernel = functools.partial(
        _evaluator_kernel,
        float(acceptance_overlap),
        float(acceptance_radius) ** 2,
        (1.0 / n_pred) if n_pred > 0 else 0.0,
        (1.0 / n_corr) if n_corr > 0 else 0.0,
        int(src_length_c),
    )

    vmem_input_bytes = 4 * (pred_tgt.size + pred_src.size + gt_tgt.size
                            + gt_src.size + ovl.size + src_t.size + tgt_t.size)
    match_bytes = 4 * ng_pad * np_pad
    # Cap at 32 MiB so the scoped request stays v7x-friendly (64 MiB physical).
    vmem_limit = int(min(max(2 * (vmem_input_bytes + match_bytes) + (1 << 20),
                             16 << 20),
                         32 << 20))

    out = pl.pallas_call(
        kernel,
        out_shape=jax.ShapeDtypeStruct((1, 2), jnp.float32),
        in_specs=[
            pl.BlockSpec(memory_space=pltpu.MemorySpace.VMEM),   # pred tgt idx
            pl.BlockSpec(memory_space=pltpu.MemorySpace.VMEM),   # pred src idx
            pl.BlockSpec(memory_space=pltpu.MemorySpace.VMEM),   # gt tgt idx
            pl.BlockSpec(memory_space=pltpu.MemorySpace.VMEM),   # gt src idx
            pl.BlockSpec(memory_space=pltpu.MemorySpace.VMEM),   # gt overlaps
            pl.BlockSpec(memory_space=pltpu.MemorySpace.VMEM),   # tgt points (3,N)
            pl.BlockSpec(memory_space=pltpu.MemorySpace.VMEM),   # src points (3,N)
            pl.BlockSpec(memory_space=pltpu.MemorySpace.SMEM),   # rot (9,)
            pl.BlockSpec(memory_space=pltpu.MemorySpace.SMEM),   # trans (3,)
        ],
        out_specs=pl.BlockSpec(memory_space=pltpu.MemorySpace.SMEM),
        cost_estimate=pl.CostEstimate(
            flops=2 * ng_pad * np_pad + 3 * (ng_pad + np_pad) + 14 * nc_pad,
            transcendentals=0,
            bytes_accessed=vmem_input_bytes + 48 + 8,
        ),
        compiler_params=pltpu.CompilerParams(vmem_limit_bytes=vmem_limit),
    )(pred_tgt, pred_src, gt_tgt, gt_src, ovl, tgt_t, src_t,
      rot_flat, trans_flat)

    pir = out[0, 0]
    ir = out[0, 1]
    if n_pred == 0:
        # torch.mean over an empty gather is NaN; mirror that (caller overrides
        # with 0.0 when the coarse branch is absent entirely).
        pir = jnp.full((), jnp.nan, jnp.float32)
    return pir, ir


# ---------------------------------------------------------------------------
# Evaluator (JAX/Pallas port of the PyTorch module)
# ---------------------------------------------------------------------------
class Evaluator:
    def __init__(self, cfg):
        self.acceptance_overlap = float(cfg['eval_acceptance_overlap'])
        self.acceptance_radius = float(cfg['eval_acceptance_radius'])

    def __call__(self, output_dict, data_dict):
        rot = data_dict['rot'][0]
        trans = data_dict['trans'][0]
        has_coarse = 'src_node_feats' in output_dict

        if has_coarse:
            gt_idx = output_dict['gt_node_corr_indices']
            gt_ovl = output_dict['gt_node_corr_overlaps']
            tgt_pred = output_dict['tgt_node_corr_indices']
            src_pred = output_dict['src_node_corr_indices']
            src_len_c = int(output_dict['src_nodes'].shape[0])
            tgt_len_c = int(output_dict['tgt_nodes'].shape[0])
            # Packed int32 key must not overflow / alias.
            assert tgt_len_c * src_len_c < 2 ** 31, "packed key overflows int32"
        else:
            # Dummy (empty) coarse inputs keep the single fused launch; PIR is
            # overridden with 0.0 below, matching the torch module.
            gt_idx = jnp.zeros((0, 2), jnp.int32)
            gt_ovl = jnp.zeros((0,), jnp.float32)
            tgt_pred = jnp.zeros((0,), jnp.int32)
            src_pred = jnp.zeros((0,), jnp.int32)
            src_len_c = 1

        pir, ir = evaluator_forward(
            gt_idx, gt_ovl, tgt_pred, src_pred,
            output_dict['tgt_corr_points'], output_dict['src_corr_points'],
            rot, trans,
            acceptance_overlap=self.acceptance_overlap,
            acceptance_radius=self.acceptance_radius,
            src_length_c=src_len_c)

        if not has_coarse:
            pir = jnp.float32(0.0)

        # TODO(synk): the torch module prints 'hej' when PIR is NaN; a kernel
        # cannot do host-side printing, so that debug print is not replicated.
        return {
            'PIR': pir,
            'IR': ir,
            'FMR': ir > 0.05,
            'num_matches': output_dict['src_corr_points'].shape[0],
        }


# ---------------------------------------------------------------------------
if __name__ == "__main__":
    key = jax.random.PRNGKey(0)
    k = jax.random.split(key, 8)

    # Small, deliberately non-(8,128)-aligned sizes to exercise padding paths.
    n_corr = 50        # fine correspondence points
    n_pred = 13        # predicted coarse node correspondences
    n_gt = 37          # ground-truth coarse node correspondences
    tgt_len_c = 12     # number of tgt nodes
    src_len_c = 10     # number of src nodes

    # Rigid transform: rotation about z by 30 degrees, small translation.
    theta = jnp.float32(jnp.pi / 6)
    c, s = jnp.cos(theta), jnp.sin(theta)
    rot = jnp.array([[c, -s, 0.0], [s, c, 0.0], [0.0, 0.0, 1.0]],
                    dtype=jnp.float32)[None]                 # (1, 3, 3)
    trans = jnp.array([[0.1], [-0.2], [0.05]],
                      dtype=jnp.float32)[None]               # (1, 3, 1)

    # Fine correspondences: tgt = src @ rot.T + trans.T + small noise so that
    # some (but not all) pairs fall inside the acceptance radius.
    src_corr_points = jax.random.normal(k[0], (n_corr, 3), dtype=jnp.float32)
    noise = 0.12 * jax.random.normal(k[1], (n_corr, 3), dtype=jnp.float32)
    tgt_corr_points = src_corr_points @ rot[0].T + trans[0].T + noise

    # Coarse correspondences; copy a few gt pairs into the predictions so the
    # PIR is non-trivial.
    gt_node_corr_indices = jnp.stack(
        [jax.random.randint(k[2], (n_gt,), 0, tgt_len_c),
         jax.random.randint(k[3], (n_gt,), 0, src_len_c)], axis=1)  # (Ng, 2)
    gt_node_corr_overlaps = jax.random.uniform(k[4], (n_gt,),
                                               dtype=jnp.float32)   # (Ng,)
    tgt_rand = jax.random.randint(k[5], (n_pred,), 0, tgt_len_c)
    src_rand = jax.random.randint(k[6], (n_pred,), 0, src_len_c)
    n_copy = 6
    tgt_node_corr_indices = jnp.concatenate(
        [gt_node_corr_indices[:n_copy, 0], tgt_rand[n_copy:]])
    src_node_corr_indices = jnp.concatenate(
        [gt_node_corr_indices[:n_copy, 1], src_rand[n_copy:]])

    output_dict = {
        'src_node_feats': jnp.zeros((src_len_c, 4), jnp.float32),  # presence flag
        'tgt_nodes': jax.random.normal(k[7], (tgt_len_c, 3), dtype=jnp.float32),
        'src_nodes': jnp.zeros((src_len_c, 3), jnp.float32),
        'gt_node_corr_indices': gt_node_corr_indices,
        'gt_node_corr_overlaps': gt_node_corr_overlaps,
        'tgt_node_corr_indices': tgt_node_corr_indices,
        'src_node_corr_indices': src_node_corr_indices,
        'tgt_corr_points': tgt_corr_points,
        'src_corr_points': src_corr_points,
    }
    data_dict = {'rot': rot, 'trans': trans}

    cfg = {'eval_acceptance_overlap': 0.1, 'eval_acceptance_radius': 0.2}
    evaluator = Evaluator(cfg)

    result = evaluator(output_dict, data_dict)
    result = jax.tree_util.tree_map(
        lambda x: jax.block_until_ready(x) if isinstance(x, jax.Array) else x,
        result)

    # ---- reference checks (plain numpy / jnp, mirror the torch code) ----
    # Fine (IR)
    src_w = src_corr_points @ rot[0].T + trans[0].T
    d = jnp.linalg.norm(tgt_corr_points - src_w, axis=1)
    ir_ref = jnp.mean((d < cfg['eval_acceptance_radius']).astype(jnp.float32))
    assert abs(float(result['IR']) - float(ir_ref)) < 1e-5

    # Coarse (PIR): scatter into dense map, gather, mean.
    gt_idx_np = np.asarray(gt_node_corr_indices)
    ovl_np = np.asarray(gt_node_corr_overlaps)
    m = ovl_np > cfg['eval_acceptance_overlap']
    gt_map = np.zeros((tgt_len_c, src_len_c), np.float32)
    gt_map[gt_idx_np[m, 0], gt_idx_np[m, 1]] = 1.0
    pir_ref = gt_map[np.asarray(tgt_node_corr_indices),
                     np.asarray(src_node_corr_indices)].mean()
    assert abs(float(result['PIR']) - float(pir_ref)) < 1e-5

    print("KERNEL_OK")
</pallas_src>

<mosaic_0001>
module attributes {stable_mosaic.version = 11 : i64} {
  func.func @_evaluator_kernel(%arg0: memref<1x128xi32, #tpu.memory_space<vmem>>, %arg1: memref<1x128xi32, #tpu.memory_space<vmem>>, %arg2: memref<40x1xi32, #tpu.memory_space<vmem>>, %arg3: memref<40x1xi32, #tpu.memory_space<vmem>>, %arg4: memref<40x1xf32, #tpu.memory_space<vmem>>, %arg5: memref<3x128xf32, #tpu.memory_space<vmem>>, %arg6: memref<3x128xf32, #tpu.memory_space<vmem>>, %arg7: memref<9xf32, #tpu.memory_space<smem>>, %arg8: memref<3xf32, #tpu.memory_space<smem>>, %arg9: memref<1x2xf32, #tpu.memory_space<smem>>) attributes {dimension_semantics = [], scalar_prefetch = 0 : i64, scratch_operands = 0 : i64, tpu.core_type = #tpu.core_type<tc>} {
    %c0 = arith.constant 0 : index
    %0 = memref.load %arg7[%c0] : memref<9xf32, #tpu.memory_space<smem>>
    %c1 = arith.constant 1 : index
    %1 = memref.load %arg7[%c1] : memref<9xf32, #tpu.memory_space<smem>>
    %c2 = arith.constant 2 : index
    %2 = memref.load %arg7[%c2] : memref<9xf32, #tpu.memory_space<smem>>
    %c3 = arith.constant 3 : index
    %3 = memref.load %arg7[%c3] : memref<9xf32, #tpu.memory_space<smem>>
    %c4 = arith.constant 4 : index
    %4 = memref.load %arg7[%c4] : memref<9xf32, #tpu.memory_space<smem>>
    %c5 = arith.constant 5 : index
    %5 = memref.load %arg7[%c5] : memref<9xf32, #tpu.memory_space<smem>>
    %c6 = arith.constant 6 : index
    %6 = memref.load %arg7[%c6] : memref<9xf32, #tpu.memory_space<smem>>
    %c7 = arith.constant 7 : index
    %7 = memref.load %arg7[%c7] : memref<9xf32, #tpu.memory_space<smem>>
    %c8 = arith.constant 8 : index
    %8 = memref.load %arg7[%c8] : memref<9xf32, #tpu.memory_space<smem>>
    %c0_0 = arith.constant 0 : index
    %9 = memref.load %arg8[%c0_0] : memref<3xf32, #tpu.memory_space<smem>>
    %c1_1 = arith.constant 1 : index
    %10 = memref.load %arg8[%c1_1] : memref<3xf32, #tpu.memory_space<smem>>
    %c2_2 = arith.constant 2 : index
    %11 = memref.load %arg8[%c2_2] : memref<3xf32, #tpu.memory_space<smem>>
    %c0_3 = arith.constant 0 : index
    %c0_4 = arith.constant 0 : index
    %12 = vector.load %arg0[%c0_3, %c0_4] : memref<1x128xi32, #tpu.memory_space<vmem>>, vector<1x128xi32>
    %c10_i32 = arith.constant 10 : i32
    %13 = vector.broadcast %c10_i32 : i32 to vector<1x128xi32>
    %14 = arith.muli %12, %13 : vector<1x128xi32>
    %c0_5 = arith.constant 0 : index
    %c0_6 = arith.constant 0 : index
    %15 = vector.load %arg1[%c0_5, %c0_6] : memref<1x128xi32, #tpu.memory_space<vmem>>, vector<1x128xi32>
    %16 = arith.addi %14, %15 : vector<1x128xi32>
    %c0_7 = arith.constant 0 : index
    %c0_8 = arith.constant 0 : index
    %17 = vector.load %arg2[%c0_7, %c0_8] : memref<40x1xi32, #tpu.memory_space<vmem>>, vector<40x1xi32>
    %c10_i32_9 = arith.constant 10 : i32
    %18 = vector.broadcast %c10_i32_9 : i32 to vector<40x1xi32>
    %19 = arith.muli %17, %18 : vector<40x1xi32>
    %c0_10 = arith.constant 0 : index
    %c0_11 = arith.constant 0 : index
    %20 = vector.load %arg3[%c0_10, %c0_11] : memref<40x1xi32, #tpu.memory_space<vmem>>, vector<40x1xi32>
    %21 = arith.addi %19, %20 : vector<40x1xi32>
    %c0_12 = arith.constant 0 : index
    %c0_13 = arith.constant 0 : index
    %22 = vector.load %arg4[%c0_12, %c0_13] : memref<40x1xf32, #tpu.memory_space<vmem>>, vector<40x1xf32>
    %cst = arith.constant 1.000000e-01 : f32
    %23 = vector.broadcast %cst : f32 to vector<40x1xf32>
    %24 = arith.cmpf ogt, %22, %23 : vector<40x1xf32>
    %c-1_i32 = arith.constant -1 : i32
    %25 = vector.broadcast %c-1_i32 : i32 to vector<40x1xi32>
    %26 = arith.select %24, %21, %25 : vector<40x1xi1>, vector<40x1xi32>
    %27 = vector.broadcast %26 : vector<40x1xi32> to vector<40x128xi32>
    %28 = vector.broadcast %16 : vector<1x128xi32> to vector<40x128xi32>
    %29 = arith.cmpi eq, %27, %28 : vector<40x128xi32>
    %30 = arith.extui %29 : vector<40x128xi1> to vector<40x128xi32>
    %31 = arith.sitofp %30 : vector<40x128xi32> to vector<40x128xf32>
    %cst_14 = arith.constant dense<0xFF800000> : vector<128xf32>
    %32 = vector.multi_reduction <maximumf>, %31, %cst_14 [0] : vector<40x128xf32> to vector<128xf32>
    %33 = vector.shape_cast %32 : vector<128xf32> to vector<1x128xf32>
    %34 = vector.shape_cast %33 : vector<1x128xf32> to vector<1x1x128xf32>
    %cst_15 = arith.constant dense<0.000000e+00> : vector<1xf32>
    %35 = vector.multi_reduction <add>, %34, %cst_15 [1, 2] : vector<1x1x128xf32> to vector<1xf32>
    %36 = vector.shape_cast %35 : vector<1xf32> to vector<1x1x1xf32>
    %37 = vector.extract %36[0, 0, 0] : f32 from vector<1x1x1xf32>
    %cst_16 = arith.constant 0.0769230798 : f32
    %38 = arith.mulf %37, %cst_16 : f32
    %c0_17 = arith.constant 0 : index
    %c0_18 = arith.constant 0 : index
    %39 = memref.load %arg9[%c0_17, %c0_18] : memref<1x2xf32, #tpu.memory_space<smem>>
    memref.store %38, %arg9[%c0_17, %c0_18] : memref<1x2xf32, #tpu.memory_space<smem>>
    %c0_19 = arith.constant 0 : index
    %c0_20 = arith.constant 0 : index
    %40 = vector.load %arg6[%c0_19, %c0_20] : memref<3x128xf32, #tpu.memory_space<vmem>>, vector<1x128xf32>
    %c1_21 = arith.constant 1 : index
    %c0_22 = arith.constant 0 : index
    %41 = vector.load %arg6[%c1_21, %c0_22] : memref<3x128xf32, #tpu.memory_space<vmem>>, vector<1x128xf32>
    %c2_23 = arith.constant 2 : index
    %c0_24 = arith.constant 0 : index
    %42 = vector.load %arg6[%c2_23, %c0_24] : memref<3x128xf32, #tpu.memory_space<vmem>>, vector<1x128xf32>
    %c0_25 = arith.constant 0 : index
    %c0_26 = arith.constant 0 : index
    %43 = vector.load %arg5[%c0_25, %c0_26] : memref<3x128xf32, #tpu.memory_space<vmem>>, vector<1x128xf32>
    %c1_27 = arith.constant 1 : index
    %c0_28 = arith.constant 0 : index
    %44 = vector.load %arg5[%c1_27, %c0_28] : memref<3x128xf32, #tpu.memory_space<vmem>>, vector<1x128xf32>
    %c2_29 = arith.constant 2 : index
    %c0_30 = arith.constant 0 : index
    %45 = vector.load %arg5[%c2_29, %c0_30] : memref<3x128xf32, #tpu.memory_space<vmem>>, vector<1x128xf32>
    %46 = vector.broadcast %0 : f32 to vector<1x128xf32>
    %47 = arith.mulf %46, %40 : vector<1x128xf32>
    %48 = vector.broadcast %1 : f32 to vector<1x128xf32>
    %49 = arith.mulf %48, %41 : vector<1x128xf32>
    %50 = arith.addf %47, %49 : vector<1x128xf32>
    %51 = vector.broadcast %2 : f32 to vector<1x128xf32>
    %52 = arith.mulf %51, %42 : vector<1x128xf32>
    %53 = arith.addf %50, %52 : vector<1x128xf32>
    %54 = vector.broadcast %9 : f32 to vector<1x128xf32>
    %55 = arith.addf %53, %54 : vector<1x128xf32>
    %56 = vector.broadcast %3 : f32 to vector<1x128xf32>
    %57 = arith.mulf %56, %40 : vector<1x128xf32>
    %58 = vector.broadcast %4 : f32 to vector<1x128xf32>
    %59 = arith.mulf %58, %41 : vector<1x128xf32>
    %60 = arith.addf %57, %59 : vector<1x128xf32>
    %61 = vector.broadcast %5 : f32 to vector<1x128xf32>
    %62 = arith.mulf %61, %42 : vector<1x128xf32>
    %63 = arith.addf %60, %62 : vector<1x128xf32>
    %64 = vector.broadcast %10 : f32 to vector<1x128xf32>
    %65 = arith.addf %63, %64 : vector<1x128xf32>
    %66 = vector.broadcast %6 : f32 to vector<1x128xf32>
    %67 = arith.mulf %66, %40 : vector<1x128xf32>
    %68 = vector.broadcast %7 : f32 to vector<1x128xf32>
    %69 = arith.mulf %68, %41 : vector<1x128xf32>
    %70 = arith.addf %67, %69 : vector<1x128xf32>
    %71 = vector.broadcast %8 : f32 to vector<1x128xf32>
    %72 = arith.mulf %71, %42 : vector<1x128xf32>
    %73 = arith.addf %70, %72 : vector<1x128xf32>
    %74 = vector.broadcast %11 : f32 to vector<1x128xf32>
    %75 = arith.addf %73, %74 : vector<1x128xf32>
    %76 = arith.subf %43, %55 : vector<1x128xf32>
    %77 = arith.subf %44, %65 : vector<1x128xf32>
    %78 = arith.subf %45, %75 : vector<1x128xf32>
    %79 = arith.mulf %76, %76 : vector<1x128xf32>
    %80 = arith.mulf %77, %77 : vector<1x128xf32>
    %81 = arith.addf %79, %80 : vector<1x128xf32>
    %82 = arith.mulf %78, %78 : vector<1x128xf32>
    %83 = arith.addf %81, %82 : vector<1x128xf32>
    %cst_31 = arith.constant 4.000000e-02 : f32
    %84 = vector.broadcast %cst_31 : f32 to vector<1x128xf32>
    %85 = arith.cmpf olt, %83, %84 : vector<1x128xf32>
    %86 = arith.extui %85 : vector<1x128xi1> to vector<1x128xi32>
    %87 = arith.sitofp %86 : vector<1x128xi32> to vector<1x128xf32>
    %88 = vector.shape_cast %87 : vector<1x128xf32> to vector<1x1x128xf32>
    %cst_32 = arith.constant dense<0.000000e+00> : vector<1xf32>
    %89 = vector.multi_reduction <add>, %88, %cst_32 [1, 2] : vector<1x1x128xf32> to vector<1xf32>
    %90 = vector.shape_cast %89 : vector<1xf32> to vector<1x1x1xf32>
    %91 = vector.extract %90[0, 0, 0] : f32 from vector<1x1x1xf32>
    %cst_33 = arith.constant 2.000000e-02 : f32
    %92 = arith.mulf %91, %cst_33 : f32
    %c0_34 = arith.constant 0 : index
    %c1_35 = arith.constant 1 : index
    %93 = memref.load %arg9[%c0_34, %c1_35] : memref<1x2xf32, #tpu.memory_space<smem>>
    memref.store %92, %arg9[%c0_34, %c1_35] : memref<1x2xf32, #tpu.memory_space<smem>>
    return
  }
}

</mosaic_0001>

<llo_original>
// kernel: evaluator_forward.1
$region0: #{evaluator_forward.1}
  #allocation0 [shape = 'u32[]', space=smem, size = 0x4, offset = 0x4, fixed_abs, tag = 'smem constant byte address 0x4 - core index']
  #allocation1 [shape = 'u32[72,128]{1,0:T(1,128)}', space=vmem, size = 0x9000, scoped, tag = 'internal scratch']
  %s0 = inlined_call_operand.vmem [shape: s32[1,128], index: 0, kind: input, shape index: {}]
  %s1 = inlined_call_operand.vmem [shape: s32[1,128], index: 1, kind: input, shape index: {}]
  %s2 = inlined_call_operand.vmem [shape: s32[40,1], index: 2, kind: input, shape index: {}]
  %s3 = inlined_call_operand.vmem [shape: s32[40,1], index: 3, kind: input, shape index: {}]
  %s4 = inlined_call_operand.vmem [shape: f32[40,1], index: 4, kind: input, shape index: {}]
  %s5 = inlined_call_operand.vmem [shape: f32[3,128], index: 5, kind: input, shape index: {}]
  %s6 = inlined_call_operand.vmem [shape: f32[3,128], index: 6, kind: input, shape index: {}]
  %s7 = inlined_call_operand.vmem [shape: f32[9], index: 7, kind: input, shape index: {}]
  %s8 = inlined_call_operand.vmem [shape: f32[3], index: 8, kind: input, shape index: {}]
  %s9 = inlined_call_operand.vmem [shape: f32[1,2], index: 9, kind: output, shape index: {}]
  %s10 = sld [smem:[#allocation0]]
  $region54: #{evaluator_forward.1} parent=0
    _
  %s12 = ssub.s32 1, %s10
  %s13 = scalar_select 0, %s12, %s10
  $region1: #{evaluator_forward.1} parent=0
    #allocation2 [shape = 'u8[512]{0}', space=smem, size = 0x200, scoped, tag = 'input window, operand 7, single buffered']
    #allocation3 [shape = 's32[1]{0}', space=sflag, size = 0x4, scoped, tag = 'scoped memory for evaluator_forward.1']
    #allocation4 [shape = 's32[1]{0}', space=sflag, size = 0x4, scoped, tag = 'scoped memory for evaluator_forward.1']
    #allocation5 [shape = 'u8[512]{0}', space=smem, size = 0x200, scoped, tag = 'input window, operand 8, single buffered']
    #allocation6 [shape = 's32[1]{0}', space=sflag, size = 0x4, scoped, tag = 'scoped memory for evaluator_forward.1']
    #allocation7 [shape = 'u8[512]{0}', space=smem, size = 0x200, scoped, tag = 'output window, operand 0, single buffered']
    %14 = vsyncpa [#allocation3], 0
    %15 = vsyncpa [#allocation6], 0
    %16 = vsyncpa [#allocation4], 0
    // Predicated region
    $region2: #{evaluator_forward.1} parent=1 // pred_check
      _
    $region3: #{evaluator_forward.1} parent=1 // pred_check_branch
      %18 = sbr.rel (0) target = $region5
    $region4: #{evaluator_forward.1} parent=1 // pred_region
      _
    $region5: #{evaluator_forward.1} parent=1 // pred_fallthru
      _
    // Predicated region
    $region6: #{evaluator_forward.1} parent=1 // pred_check
      _
    $region7: #{evaluator_forward.1} parent=1 // pred_check_branch
      %20 = sbr.rel (0) target = $region9
    $region8: #{evaluator_forward.1} parent=1 // pred_region
      _
    $region9: #{evaluator_forward.1} parent=1 // pred_fallthru
      _
    // Predicated region
    $region10: #{evaluator_forward.1} parent=1 // pred_check
      _
    $region11: #{evaluator_forward.1} parent=1 // pred_check_branch
      %22 = sbr.rel (0) target = $region13
    $region12: #{evaluator_forward.1} parent=1 // pred_region
      _
    $region13: #{evaluator_forward.1} parent=1 // pred_fallthru
      _
    // Predicated region
    $region14: #{evaluator_forward.1} parent=1 // pred_check
      _
    $region15: #{evaluator_forward.1} parent=1 // pred_check_branch
      %24 = sbr.rel (0) target = $region17
    $region16: #{evaluator_forward.1} parent=1 // pred_region
      _
    $region17: #{evaluator_forward.1} parent=1 // pred_fallthru
      _
    // Predicated region
    $region18: #{evaluator_forward.1} parent=1 // pred_check
      _
    $region19: #{evaluator_forward.1} parent=1 // pred_check_branch
      %26 = sbr.rel (0) target = $region21
    $region20: #{evaluator_forward.1} parent=1 // pred_region
      _
    $region21: #{evaluator_forward.1} parent=1 // pred_fallthru
      _
    // Predicated region
    $region22: #{evaluator_forward.1} parent=1 // pred_check
      _
    $region23: #{evaluator_forward.1} parent=1 // pred_check_branch
      %28 = sbr.rel (0) target = $region25
    $region24: #{evaluator_forward.1} parent=1 // pred_region
      _
    $region25: #{evaluator_forward.1} parent=1 // pred_fallthru
      _
    // Predicated region
    $region26: #{evaluator_forward.1} parent=1 // pred_check
      _
    $region27: #{evaluator_forward.1} parent=1 // pred_check_branch
      %30 = sbr.rel (0) target = $region29
    $region28: #{evaluator_forward.1} parent=1 // pred_region
      _
    $region29: #{evaluator_forward.1} parent=1 // pred_fallthru
      _
    // Predicated region
    $region30: #{evaluator_forward.1} parent=1 // pred_check
      _
    $region31: #{evaluator_forward.1} parent=1 // pred_check_branch
      %32 = sbr.rel (0) target = $region33
    $region32: #{evaluator_forward.1} parent=1 // pred_region
      %34 = vsyncadd [#allocation3], 0
      %s36 = sshll.u32 %s7, 4
      %s37 = int_to_ptr.vmem [resolvable:$true] %s36
      %39 = dma.vmem_to_smem %s37, 16, [#allocation2], [#allocation3]
    $region33: #{evaluator_forward.1} parent=1 // pred_fallthru
      _
    // Predicated region
    $region34: #{evaluator_forward.1} parent=1 // pred_check
      _
    $region35: #{evaluator_forward.1} parent=1 // pred_check_branch
      %41 = sbr.rel (0) target = $region37
    $region36: #{evaluator_forward.1} parent=1 // pred_region
      %43 = vsyncadd [#allocation6], 0
      %s45 = sshll.u32 %s8, 4
      %s46 = int_to_ptr.vmem [resolvable:$true] %s45
      %48 = dma.vmem_to_smem %s46, 16, [#allocation5], [#allocation6]
    $region37: #{evaluator_forward.1} parent=1 // pred_fallthru
      _
    // Predicated region
    $region38: #{evaluator_forward.1} parent=1 // pred_check
      _
    $region39: #{evaluator_forward.1} parent=1 // pred_check_branch
      %50 = sbr.rel (0) target = $region41
    $region40: #{evaluator_forward.1} parent=1 // pred_region
      %52 = dma.done [#allocation3], 16
    $region41: #{evaluator_forward.1} parent=1 // pred_fallthru
      _
    // Predicated region
    $region42: #{evaluator_forward.1} parent=1 // pred_check
      _
    $region43: #{evaluator_forward.1} parent=1 // pred_check_branch
      %54 = sbr.rel (0) target = $region45
    $region44: #{evaluator_forward.1} parent=1 // pred_region
      %56 = dma.done [#allocation6], 16
    $region45: #{evaluator_forward.1} parent=1 // pred_fallthru
      _
    %57 = sfence
    %s58 = sld [smem:[#allocation2]]
    %s59 = sld [smem:[#allocation2 + $0x1]]
    %s60 = sld [smem:[#allocation2 + $0x2]]
    %s61 = sld [smem:[#allocation2 + $0x3]]
    %s62 = sld [smem:[#allocation2 + $0x4]]
    %s63 = sld [smem:[#allocation2 + $0x5]]
    %s64 = sld [smem:[#allocation2 + $0x6]]
    %s65 = sld [smem:[#allocation2 + $0x7]]
    %s66 = sld [smem:[#allocation2 + $0x8]]
    %s67 = sld [smem:[#allocation5]]
    %s68 = sld [smem:[#allocation5 + $0x1]]
    %s69 = sld [smem:[#allocation5 + $0x2]]
    %v70 = vld [vmem:[%s0] sm:$0x1]
    %v71 = vmul.u32 %v70, 10
    %v72 = vld [vmem:[%s1] sm:$0x1]
    %v73 = vadd.s32 %v71, %v72
    %v74 = vld [vmem:[%s2] sm:$0xff]
    %v75 = vld [vmem:[%s2 + $0x8] sm:$0xff]
    %v76 = vld [vmem:[%s2 + $0x10] sm:$0xff]
    %v77 = vld [vmem:[%s2 + $0x18] sm:$0xff]
    %v78 = vld [vmem:[%s2 + $0x20] sm:$0xff]
    %v79 = vmul.u32 %v74, 10
    %v80 = vmul.u32 %v75, 10
    %v81 = vmul.u32 %v76, 10
    %v82 = vmul.u32 %v77, 10
    %v83 = vmul.u32 %v78, 10
    %v84 = vld [vmem:[%s3] sm:$0xff]
    %v85 = vld [vmem:[%s3 + $0x8] sm:$0xff]
    %v86 = vld [vmem:[%s3 + $0x10] sm:$0xff]
    %v87 = vld [vmem:[%s3 + $0x18] sm:$0xff]
    %v88 = vld [vmem:[%s3 + $0x20] sm:$0xff]
    %v89 = vadd.s32 %v79, %v84
    %v90 = vadd.s32 %v80, %v85
    %v91 = vadd.s32 %v81, %v86
    %v92 = vadd.s32 %v82, %v87
    %v93 = vadd.s32 %v83, %v88
    %v94 = vld [vmem:[%s4] sm:$0xff]
    %v95 = vld [vmem:[%s4 + $0x8] sm:$0xff]
    %v96 = vld [vmem:[%s4 + $0x10] sm:$0xff]
    %v97 = vld [vmem:[%s4 + $0x18] sm:$0xff]
    %v98 = vld [vmem:[%s4 + $0x20] sm:$0xff]
    %vm99 = vcmp.gt.f32.partialorder %v94, 0.1
    %vm100 = vcmp.gt.f32.partialorder %v95, 0.1
    %vm101 = vcmp.gt.f32.partialorder %v96, 0.1
    %vm102 = vcmp.gt.f32.partialorder %v97, 0.1
    %vm103 = vcmp.gt.f32.partialorder %v98, 0.1
    %v104 = vsel %vm99, %v89, 4294967295
    %v105 = vsel %vm100, %v90, 4294967295
    %v106 = vsel %vm101, %v91, 4294967295
    %v107 = vsel %vm102, %v92, 4294967295
    %v108 = vsel %vm103, %v93, 4294967295
    %109 = vset.pattern.permute.xlu0 0
    %110 = vperm.xlu0 %109, %v104
    %v111 = vpop.permute.xlu0 %110
    %112 = vset.pattern.permute.xlu0 0
    %113 = vperm.xlu0 %112, %v105
    %v114 = vpop.permute.xlu0 %113
    %115 = vset.pattern.permute.xlu0 0
    %116 = vperm.xlu0 %115, %v106
    %v117 = vpop.permute.xlu0 %116
    %118 = vset.pattern.permute.xlu0 0
    %119 = vperm.xlu0 %118, %v107
    %v120 = vpop.permute.xlu0 %119
    %121 = vset.pattern.permute.xlu0 0
    %122 = vperm.xlu0 %121, %v108
    %v123 = vpop.permute.xlu0 %122
    %v124 = vperm.slane %v73, 0
    %vm125 = vcmp.eq.s32.totalorder %v111, %v124
    %vm126 = vcmp.eq.s32.totalorder %v114, %v124
    %vm127 = vcmp.eq.s32.totalorder %v117, %v124
    %vm128 = vcmp.eq.s32.totalorder %v120, %v124
    %vm129 = vcmp.eq.s32.totalorder %v123, %v124
    %v130 = vsel %vm125, 1, 0
    %v131 = vsel %vm126, 1, 0
    %v132 = vsel %vm127, 1, 0
    %v133 = vsel %vm128, 1, 0
    %v134 = vsel %vm129, 1, 0
    %v135 = vcvt.s32.f32 %v130
    %v136 = vcvt.s32.f32 %v131
    %v137 = vcvt.s32.f32 %v132
    %v138 = vcvt.s32.f32 %v133
    %v139 = vcvt.s32.f32 %v134
    %v140 = vmax.f32 %v135, %v139
    %v141 = vmax.f32 %v140, %v136
    %v142 = vmax.f32 %v137, %v138
    %v143 = vmax.f32 %v141, %v142
    %v144 = vrot.slane %v143, 4
    %v145 = vmax.f32 %v143, %v144
    %v146 = vrot.slane %v145, 2
    %v147 = vmax.f32 %v145, %v146
    %v148 = vrot.slane %v147, 1
    %v149 = vmax.f32 %v147, %v148
    %vm150 = vcmask 1040384
    %v151 = vsel %vm150, %v149, 0.0
    %152 = vadd.xlane.f32.xlu0 %v151
    %v153 = vpop.xlane.xlu0 %152
    %v154 = vrot.slane %v153, 4
    %v155 = vadd.f32 %v153, %v154
    %v156 = vrot.slane %v155, 2
    %v157 = vadd.f32 %v155, %v156
    %v158 = vrot.slane %v157, 1
    %v159 = vadd.f32 %v157, %v158
    %s160 = vtos %v159
    %s161 = smul.f32 %s160, 0.07692308
    %s162 = scalar_lea.smem [#allocation7], 0
    %163 = sst [smem:[%s162]] %s161
    %v164 = vld [vmem:[%s6] sm:$0x1]
    %v165 = vld [vmem:[%s6 + $0x1] sm:$0x1]
    %v166 = vld [vmem:[%s6 + $0x2] sm:$0x1]
    %v167 = vld [vmem:[%s5] sm:$0x1]
    %v168 = vld [vmem:[%s5 + $0x1] sm:$0x1]
    %v169 = vld [vmem:[%s5 + $0x2] sm:$0x1]
    %v170 = vstv %s58
    %v171 = vmul.f32 %v170, %v164
    %v172 = vstv %s59
    %v173 = vmul.f32 %v172, %v165
    %v174 = vadd.f32 %v171, %v173
    %v175 = vstv %s60
    %v176 = vmul.f32 %v175, %v166
    %v177 = vadd.f32 %v174, %v176
    %v178 = vstv %s67
    %v179 = vadd.f32 %v177, %v178
    %v180 = vstv %s61
    %v181 = vmul.f32 %v180, %v164
    %v182 = vstv %s62
    %v183 = vmul.f32 %v182, %v165
    %v184 = vadd.f32 %v181, %v183
    %v185 = vstv %s63
    %v186 = vmul.f32 %v185, %v166
    %v187 = vadd.f32 %v184, %v186
    %v188 = vstv %s68
    %v189 = vadd.f32 %v187, %v188
    %v190 = vstv %s64
    %v191 = vmul.f32 %v190, %v164
    %v192 = vstv %s65
    %v193 = vmul.f32 %v192, %v165
    %v194 = vadd.f32 %v191, %v193
    %v195 = vstv %s66
    %v196 = vmul.f32 %v195, %v166
    %v197 = vadd.f32 %v194, %v196
    %v198 = vstv %s69
    %v199 = vadd.f32 %v197, %v198
    %v200 = vsub.f32 %v167, %v179
    %v201 = vsub.f32 %v168, %v189
    %v202 = vsub.f32 %v169, %v199
    %v203 = vmul.f32 %v200, %v200
    %v204 = vmul.f32 %v201, %v201
    %v205 = vadd.f32 %v203, %v204
    %v206 = vmul.f32 %v202, %v202
    %v207 = vadd.f32 %v205, %v206
    %vm208 = vcmp.lt.f32.partialorder %v207, 0.04
    %v209 = vsel %vm208, 1, 0
    %v210 = vcvt.s32.f32 %v209
    %v211 = vsel %vm150, %v210, 0.0
    %212 = vadd.xlane.f32.xlu0 %v211
    %v213 = vpop.xlane.xlu0 %212
    %v214 = vrot.slane %v213, 4
    %v215 = vadd.f32 %v213, %v214
    %v216 = vrot.slane %v215, 2
    %v217 = vadd.f32 %v215, %v216
    %v218 = vrot.slane %v217, 1
    %v219 = vadd.f32 %v217, %v218
    %s220 = vtos %v219
    %s221 = smul.f32 %s220, 0.02
    %s222 = scalar_lea.smem [#allocation7], 1
    %223 = sst [smem:[%s222]] %s221
    // Predicated region
    $region46: #{evaluator_forward.1} parent=1 // pred_check
      _
    $region47: #{evaluator_forward.1} parent=1 // pred_check_branch
      %225 = sbr.rel (0) target = $region49
    $region48: #{evaluator_forward.1} parent=1 // pred_region
      %227 = vsyncadd [#allocation4], 0
      %s229 = sshll.u32 %s9, 4
      %s230 = int_to_ptr.vmem [resolvable:$true] %s229
      %232 = dma.smem_to_vmem [#allocation7], 16, %s230, [#allocation4]
    $region49: #{evaluator_forward.1} parent=1 // pred_fallthru
      _
    // Predicated region
    $region50: #{evaluator_forward.1} parent=1 // pred_check
      _
    $region51: #{evaluator_forward.1} parent=1 // pred_check_branch
      %234 = sbr.rel (0) target = $region53
    $region52: #{evaluator_forward.1} parent=1 // pred_region
      %236 = dma.done [#allocation4], 16
    $region53: #{evaluator_forward.1} parent=1 // pred_fallthru
      _
    %237 = sfence
    %238 = vsyncpa [#allocation3], 1
    %239 = vsyncpa [#allocation6], 1
    %240 = vsyncpa [#allocation4], 1

</llo_original>
